<compile_context>
chip_gen: v7x
topology: tpu7x:2x2x1
jax: 0.10.0
libtpu: 0.0.40
codegen_flags: <defaults>
</compile_context>

<pallas_src>
import jax
import jax.numpy as jnp
from jax.experimental import pallas as pl
from jax.experimental.pallas import tpu as pltpu


def _drop_path_kernel(scale_ref, x_ref, o_ref):
    # scale_ref: (B, 1) f32 per-sample {0, 1/keep_prob};  x_ref/o_ref: (B, TN) tile.
    scale = scale_ref[...].astype(x_ref.dtype)      # cast once per tile (bf16-friendly)
    o_ref[...] = x_ref[...] * scale                 # broadcast over lanes, pure VPU


def _round_up(v: int, m: int) -> int:
    return (v + m - 1) // m * m


def drop_path_pallas(x, drop_prob: float = 0.0, training: bool = False, *, key=None):
    """DropPath forward.  x: (B, C, H, W) (any trailing layout; flattened per sample)."""
    if drop_prob == 0.0 or not training:
        return x

    keep_prob = 1.0 - drop_prob
    if key is None:
        key = jax.random.PRNGKey(0)

    b = x.shape[0]
    n = 1
    for d in x.shape[1:]:
        n *= d
    x2d = x.reshape(b, n)

    # PyTorch semantics: floor(keep_prob + U[0,1)) -> Bernoulli(keep_prob) in {0,1}.
    u = jax.random.uniform(key, (b, 1), dtype=jnp.float32)
    mask = jnp.floor(keep_prob + u)
    scale = mask * (1.0 / keep_prob)                # (B, 1) f32

    itemsize = jnp.dtype(x.dtype).itemsize

    # Lane-dense tile along the feature axis; keep 2 buffers x (in + out) small.
    tn = min(8192, _round_up(n, 128))
    vmem_budget = 8 * 1024 * 1024                   # conservative for all generations
    while tn > 128 and 4 * b * tn * itemsize > vmem_budget:
        tn //= 2
    tn = max(128, tn)

    # Pad N so the grid divides evenly (padding columns are multiplied by the
    # same per-row scale and sliced away afterwards).
    n_pad = _round_up(n, tn)
    if n_pad != n:
        x2d = jnp.pad(x2d, ((0, 0), (0, n_pad - n)))

    grid = (n_pad // tn,)

    out2d = pl.pallas_call(
        _drop_path_kernel,
        out_shape=jax.ShapeDtypeStruct((b, n_pad), x.dtype),
        grid=grid,
        in_specs=[
            pl.BlockSpec((b, 1), lambda i: (0, 0)),     # per-sample scale (resident)
            pl.BlockSpec((b, tn), lambda i: (0, i)),    # feature tile
        ],
        out_specs=pl.BlockSpec((b, tn), lambda i: (0, i)),
        compiler_params=pltpu.CompilerParams(
            dimension_semantics=("parallel",),          # shard over TCs on v7x
        ),
        cost_estimate=pl.CostEstimate(
            flops=2 * b * n_pad,
            transcendentals=0,
            bytes_accessed=2 * b * n_pad * itemsize + b * 4,
        ),
    )(scale, x2d)

    if n_pad != n:
        out2d = out2d[:, :n]
    return out2d.reshape(x.shape)


if __name__ == "__main__":
    key = jax.random.PRNGKey(0)
    x_key, mask_key = jax.random.split(key)

    # Small NCHW input consistent with the module's forward.
    x = jax.random.normal(x_key, (2, 4, 16, 16), dtype=jnp.float32)
    drop_prob = 0.2
    keep_prob = 1.0 - drop_prob

    # Inference path (drop_prob==0 or not training) is identity, matching PyTorch.
    y_eval = drop_path_pallas(x, drop_prob=drop_prob, training=False)
    assert jnp.allclose(y_eval, x)

    # Training path: per-sample keep/drop with 1/keep_prob rescale.
    y_train = drop_path_pallas(x, drop_prob=drop_prob, training=True, key=mask_key)
    y_train = jax.block_until_ready(y_train)

    # Sanity: each batch row must be either all-zero or exactly x / keep_prob.
    for i in range(x.shape[0]):
        row_out = y_train[i]
        row_in = x[i] / keep_prob
        is_dropped = bool(jnp.all(row_out == 0.0))
        is_kept = bool(jnp.allclose(row_out, row_in, atol=1e-5, rtol=1e-5))
        assert is_dropped or is_kept, f"row {i} neither dropped nor kept"

    print("KERNEL_OK")
</pallas_src>

<mosaic_0001>
module attributes {stable_mosaic.version = 11 : i64} {
  func.func @_drop_path_kernel(%arg0: i32, %arg1: memref<2x1xf32, #tpu.memory_space<vmem>>, %arg2: memref<2x1024xf32, #tpu.memory_space<vmem>>, %arg3: memref<2x1024xf32, #tpu.memory_space<vmem>>) attributes {dimension_semantics = [#tpu.dimension_semantics<parallel>], iteration_bounds = array<i64: 1>, scalar_prefetch = 0 : i64, scratch_operands = 0 : i64, tpu.core_type = #tpu.core_type<tc>, window_params = [{pipeline_mode = #tpu.pipeline_mode<synchronous>, transform_indices = @transform_0, window_bounds = array<i64: 2, 1>}, {transform_indices = @transform_1, window_bounds = array<i64: 2, 1024>}, {transform_indices = @transform_2, window_bounds = array<i64: 2, 1024>}]} {
    %c0 = arith.constant 0 : index
    %c0_0 = arith.constant 0 : index
    %0 = vector.load %arg1[%c0, %c0_0] : memref<2x1xf32, #tpu.memory_space<vmem>>, vector<2x1xf32>
    %c0_1 = arith.constant 0 : index
    %c0_2 = arith.constant 0 : index
    %1 = vector.load %arg2[%c0_1, %c0_2] : memref<2x1024xf32, #tpu.memory_space<vmem>>, vector<2x1024xf32>
    %2 = vector.broadcast %0 : vector<2x1xf32> to vector<2x1024xf32>
    %3 = arith.mulf %1, %2 : vector<2x1024xf32>
    %c0_3 = arith.constant 0 : index
    %c0_4 = arith.constant 0 : index
    %4 = vector.load %arg3[%c0_3, %c0_4] : memref<2x1024xf32, #tpu.memory_space<vmem>>, vector<2x1024xf32>
    tpu.vector_store %arg3[%c0_3, %c0_4], %3 {strides = array<i32>} : memref<2x1024xf32, #tpu.memory_space<vmem>>, vector<2x1024xf32>,
    return
  }
  func.func @transform_0(%arg0: i32) -> (i32, i32) {
    %c0_i32 = arith.constant 0 : i32
    %c0_i32_0 = arith.constant 0 : i32
    %c0_i32_1 = arith.constant 0 : i32
    return %c0_i32, %c0_i32_0 : i32, i32
  }
  func.func @transform_1(%arg0: i32) -> (i32, i32) {
    %c0_i32 = arith.constant 0 : i32
    %c0_i32_0 = arith.constant 0 : i32
    return %c0_i32, %arg0 : i32, i32
  }
  func.func @transform_2(%arg0: i32) -> (i32, i32) {
    %c0_i32 = arith.constant 0 : i32
    %c0_i32_0 = arith.constant 0 : i32
    return %c0_i32, %arg0 : i32, i32
  }
}

</mosaic_0001>

<llo_original>
// kernel: tpu_custom_call.1
$region0: #{tpu_custom_call.1}
  #allocation0 [shape = 'u32[]', space=smem, size = 0x4, offset = 0x4, fixed_abs, tag = 'smem constant byte address 0x4 - core index']
  #allocation1 [shape = 'u32[144,128]{1,0:T(1,128)}', space=vmem, size = 0x12000, scoped, tag = 'internal scratch']
  %s0 = inlined_call_operand.vmem [shape: f32[2,1], index: 0, kind: input, shape index: {}]
  %s1 = inlined_call_operand.hbm [shape: f32[2,1024], index: 1, kind: input, shape index: {}]
  %s2 = inlined_call_operand.hbm [shape: f32[2,1024], index: 2, kind: output, shape index: {}]
  %s3 = sld [smem:[#allocation0]]
  $region22: #{tpu_custom_call.1} parent=0
    _
  %s5 = ssub.s32 1, %s3
  %s6 = scalar_select 0, %s5, %s3
  $region1: #{tpu_custom_call.1} parent=0
    #allocation2 [shape = 'u8[8192]{0}', space=vmem, size = 0x2000, scoped, tag = 'input window, operand 1, single buffered']
    #allocation3 [shape = 's32[1]{0}', space=sflag, size = 0x4, scoped, tag = 'scoped memory for tpu_custom_call.1']
    #allocation4 [shape = 's32[1]{0}', space=sflag, size = 0x4, scoped, tag = 'scoped memory for tpu_custom_call.1']
    #allocation5 [shape = 'u8[8192]{0}', space=vmem, size = 0x2000, scoped, tag = 'output window, operand 0, single buffered']
    %7 = vsyncpa [#allocation3], 0
    %8 = vsyncpa [#allocation4], 0
    // Predicated region
    $region2: #{tpu_custom_call.1} parent=1 // pred_check
      _
    $region3: #{tpu_custom_call.1} parent=1 // pred_check_branch
      %10 = sbr.rel (0) target = $region5
    $region4: #{tpu_custom_call.1} parent=1 // pred_region
      _
    $region5: #{tpu_custom_call.1} parent=1 // pred_fallthru
      _
    // Predicated region
    $region6: #{tpu_custom_call.1} parent=1 // pred_check
      _
    $region7: #{tpu_custom_call.1} parent=1 // pred_check_branch
      %12 = sbr.rel (0) target = $region9
    $region8: #{tpu_custom_call.1} parent=1 // pred_region
      %s14 = ssub.s32 256, 256
      %15 = vsyncadd [#allocation3], %s14
      %s17 = sshll.u32 [#allocation2], 4
      %s18 = int_to_ptr.vmem [resolvable:$true] %s17
      %20 = dma.hbm_to_vmem [thread:$0]  %s1, 256, %s18, [#allocation3]
    $region9: #{tpu_custom_call.1} parent=1 // pred_fallthru
      _
    // Predicated region
    $region10: #{tpu_custom_call.1} parent=1 // pred_check
      _
    $region11: #{tpu_custom_call.1} parent=1 // pred_check_branch
      %22 = sbr.rel (0) target = $region13
    $region12: #{tpu_custom_call.1} parent=1 // pred_region
      %23 = dma.done [#allocation3], 256
    $region13: #{tpu_custom_call.1} parent=1 // pred_fallthru
      _
    %v24 = vld [vmem:[%s0] sm:$0x3]
    %v25 = vld [vmem:[#allocation2] sm:$0xff]
    %v26 = vld [vmem:[#allocation2 + $0x8] sm:$0xff]
    %28 = vset.pattern.permute.xlu0 0
    %29 = vperm.xlu0 %28, %v24
    %v30 = vpop.permute.xlu0 %29
    %v32 = vunpack.c.l.s4 269488144
    %v33 = vunpack.c.0.s8 %v32
    %v34 = vlaneseq
    %v35 = vshrl.u32 %v34, 7
    %v36 = vsub.s32 %v33, %v35
    %v37 = vrot.slane %v30, %v36
    %v39 = vmul.f32 %v25, %v37
    %v40 = vmul.f32 %v26, %v37
    %41 = vst [vmem:[#allocation5] sm:$0xff] %v39
    %42 = vst [vmem:[#allocation5 + $0x8] sm:$0xff] %v40
    // Predicated region
    $region14: #{tpu_custom_call.1} parent=1 // pred_check
      _
    $region15: #{tpu_custom_call.1} parent=1 // pred_check_branch
      %44 = sbr.rel (0) target = $region17
    $region16: #{tpu_custom_call.1} parent=1 // pred_region
      %s46 = ssub.s32 256, 256
      %47 = vsyncadd [#allocation4], %s46
      %s49 = sshll.u32 [#allocation5], 4
      %s50 = int_to_ptr.vmem [resolvable:$true] %s49
      %52 = dma.vmem_to_hbm [thread:$0]  %s50, 256, %s2, [#allocation4]
    $region17: #{tpu_custom_call.1} parent=1 // pred_fallthru
      _
    // Predicated region
    $region18: #{tpu_custom_call.1} parent=1 // pred_check
      _
    $region19: #{tpu_custom_call.1} parent=1 // pred_check_branch
      %54 = sbr.rel (0) target = $region21
    $region20: #{tpu_custom_call.1} parent=1 // pred_region
      %55 = dma.done [#allocation4], 256
    $region21: #{tpu_custom_call.1} parent=1 // pred_fallthru
      _
    %56 = vsyncpa [#allocation3], 1
    %57 = vsyncpa [#allocation4], 1

</llo_original>
